<compile_context>
chip_gen: v7x
topology: tpu7x:2x2x1
jax: 0.10.0
libtpu: 0.0.40
codegen_flags: <defaults>
</compile_context>

<pallas_src>
import functools

import jax
import jax.numpy as jnp
from jax.experimental import pallas as pl
from jax.experimental.pallas import tpu as pltpu


def _emb_dropout_gather_kernel(ids_ref, coef_ref, weight_ref, out_ref,
                               rows_ref, sems):
    # ids_ref   : SMEM (T_pad,) int32          scalar-prefetched token ids
    # coef_ref  : VMEM (t_tile, 1)             per-token mask * scale
    # weight_ref: HBM  (V, D)                  full table, gathered row by row
    # out_ref   : VMEM (t_tile, D)             output tile
    # rows_ref  : VMEM (2 * t_tile, D) scratch double-buffered gathered rows
    # sems      : DMA semaphores (2,)          one per buffer slot
    t_tile = out_ref.shape[0]
    i = pl.program_id(0)
    n = pl.num_programs(0)
    last_id_slot = ids_ref.shape[0] - 1

    def issue_tile(tile_idx, slot):
        base = slot * t_tile

        @pl.loop(0, t_tile)
        def _(t):
            # Clamp is defensive only: the prefetch branch is runtime-guarded.
            idx = jnp.minimum(tile_idx * t_tile + t, last_id_slot)
            row = ids_ref[idx]
            pltpu.make_async_copy(
                weight_ref.at[pl.ds(row, 1), :],
                rows_ref.at[pl.ds(base + t, 1), :],
                sems.at[slot],
            ).start()

    # Prime the pipeline: gather tile 0 into slot 0 on the first grid step.
    @pl.when(i == 0)
    def _():
        issue_tile(0, 0)

    slot = i % 2

    # Prefetch the next tile's rows into the other slot before blocking.
    @pl.when(i + 1 < n)
    def _():
        issue_tile(i + 1, 1 - slot)

    # Wait for all row DMAs of the current tile (shared per-slot semaphore;
    # every row copy has identical size so t_tile waits balance the signals).
    base = pl.multiple_of(slot * t_tile, t_tile)

    @pl.loop(0, t_tile)
    def _(t):
        pltpu.make_async_copy(
            weight_ref.at[pl.ds(0, 1), :],
            rows_ref.at[pl.ds(base + t, 1), :],
            sems.at[slot],
        ).wait()

    # Masked + scaled gather: per-row coefficient broadcast over D.
    gathered = rows_ref[pl.ds(base, t_tile), :]
    out_ref[...] = (gathered * coef_ref[...]).astype(out_ref.dtype)


def embedding_dropout_forward(
    words,            # (B, S) int token ids
    weight,           # (V, D) embedding weight
    embed_p: float,
    *,
    key,
    training: bool = True,
    scale=None,
    t_tile: int = 128,   # 256 works well on v6e/v7x; 128 is safe everywhere
):
    V, D = weight.shape
    B, S = words.shape
    dtype = weight.dtype

    # Row-dropout mask (V, 1), same semantics as dropout_mask(..., (V, 1), p).
    if training and embed_p != 0.0:
        keep = jax.random.bernoulli(key, 1.0 - embed_p, (V, 1))
        mask = keep.astype(dtype) / jnp.asarray(1.0 - embed_p, dtype)
    else:
        mask = jnp.ones((V, 1), dtype)

    # `if scale:` in the reference -> falsy scale means no scaling.
    scale_val = scale if scale else 1.0

    # Flatten the token stream, pad to a multiple of t_tile, clamp to valid
    # rows so padded / out-of-range ids can never drive an out-of-bounds DMA.
    ids = words.reshape(-1).astype(jnp.int32)
    T = ids.shape[0]
    n_tiles = pl.cdiv(T, t_tile)
    T_pad = n_tiles * t_tile
    ids = jnp.pad(ids, (0, T_pad - T))
    ids = jnp.clip(ids, 0, V - 1)

    # Per-token coefficient = mask[id] * scale  (T_pad, 1).  Applying the mask
    # per gathered row removes all (V, D) elementwise work from the kernel.
    coef = mask[ids] * jnp.asarray(scale_val, dtype)

    out = pl.pallas_call(
        _emb_dropout_gather_kernel,
        out_shape=jax.ShapeDtypeStruct((T_pad, D), dtype),
        grid_spec=pltpu.PrefetchScalarGridSpec(
            num_scalar_prefetch=1,
            grid=(n_tiles,),
            in_specs=[
                pl.BlockSpec((t_tile, 1), lambda i, _ids: (i, 0)),  # coef
                pl.BlockSpec(memory_space=pl.ANY),                  # weight: HBM
            ],
            out_specs=pl.BlockSpec((t_tile, D), lambda i, _ids: (i, 0)),
            scratch_shapes=[
                pltpu.VMEM((2 * t_tile, D), dtype),   # double-buffered rows
                pltpu.SemaphoreType.DMA((2,)),        # one sem per slot
            ],
        ),
        compiler_params=pltpu.CompilerParams(
            # Cross-step DMA prefetch (primed at i == 0) needs a sequential grid.
            dimension_semantics=("arbitrary",),
        ),
    )(ids, coef, weight)

    # TODO(synk): F.embedding's max_norm in-place renormalization is not
    # implemented (assumed max_norm=None, the nn.Embedding default).
    return out[:T].reshape(B, S, D)


if __name__ == "__main__":
    # Small deterministic setup: vocab=128, dim=128, batch=2, seq=8.
    V, D, B, S = 128, 128, 2, 8
    embed_p = 0.1

    root = jax.random.PRNGKey(0)
    k_weight, k_words, k_mask = jax.random.split(root, 3)

    weight = jax.random.normal(k_weight, (V, D), dtype=jnp.float32)
    words = jax.random.randint(k_words, (B, S), 0, V, dtype=jnp.int32)

    fwd = jax.jit(
        functools.partial(
            embedding_dropout_forward, embed_p=embed_p, training=True, scale=2.0
        )
    )
    out = fwd(words, weight, key=k_mask)
    out = jax.block_until_ready(out)

    # Reference check in plain JAX (same mask / same semantics).
    keep = jax.random.bernoulli(k_mask, 1.0 - embed_p, (V, 1))
    mask = keep.astype(weight.dtype) / (1.0 - embed_p)
    ref = (weight * mask * 2.0)[words]
    assert out.shape == (B, S, D)
    assert jnp.allclose(out, ref, atol=1e-5, rtol=1e-5)

    print("KERNEL_OK")
</pallas_src>

<mosaic_0001>
module attributes {stable_mosaic.version = 11 : i64} {
  func.func @_emb_dropout_gather_kernel(%arg0: i32, %arg1: memref<128xi32, #tpu.memory_space<smem>>, %arg2: memref<128x1xf32, #tpu.memory_space<vmem>>, %arg3: memref<128x128xf32, #tpu.memory_space<any>>, %arg4: memref<128x128xf32, #tpu.memory_space<vmem>>, %arg5: memref<256x128xf32, #tpu.memory_space<vmem>>, %arg6: memref<2x!tpu.dma_semaphore, #tpu.memory_space<semaphore_mem>>) attributes {dimension_semantics = [#tpu.dimension_semantics<arbitrary>], iteration_bounds = array<i64: 1>, scalar_prefetch = 1 : i64, scratch_operands = 2 : i64, tpu.core_type = #tpu.core_type<tc>, window_params = [{transform_indices = @transform_0, window_bounds = array<i64: 128, 1>}, {}, {transform_indices = @transform_2, window_bounds = array<i64: 128, 128>}]} {
    %c0_i32 = arith.constant 0 : i32
    %0 = arith.cmpi eq, %arg0, %c0_i32 : i32
    %1 = arith.extui %0 : i1 to i32
    %c0_i32_0 = arith.constant 0 : i32
    %2 = arith.cmpi ne, %1, %c0_i32_0 : i32
    scf.if %2 {
      %c0_i32_16 = arith.constant 0 : i32
      %c128_i32_17 = arith.constant 128 : i32
      %26 = arith.addi %c0_i32_16, %c128_i32_17 : i32
      %c1_i32_18 = arith.constant 1 : i32
      scf.for %arg7 = %c0_i32_16 to %26 step %c1_i32_18  : i32 {
        %c1_i32_20 = arith.constant 1 : i32
        %27 = arith.muli %arg7, %c1_i32_20 : i32
        %c0_i32_21 = arith.constant 0 : i32
        %28 = arith.addi %c0_i32_21, %27 : i32
        %c0_i32_22 = arith.constant 0 : i32
        %29 = arith.addi %c0_i32_22, %28 : i32
        %c127_i32 = arith.constant 127 : i32
        %30 = arith.minsi %29, %c127_i32 : i32
        %31 = arith.index_cast %30 : i32 to index
        %32 = memref.load %arg1[%31] : memref<128xi32, #tpu.memory_space<smem>>
        %c0_i32_23 = arith.constant 0 : i32
        %33 = arith.addi %c0_i32_23, %28 : i32
        %c0_i32_24 = arith.constant 0 : i32
        %c0_i32_25 = arith.constant 0 : i32
        %34 = tpu.memref_slice %arg3[%32, %c0_i32_25] : memref<128x128xf32, #tpu.memory_space<any>> -> memref<1x128xf32, #tpu.memory_space<any>>
        %c0_i32_26 = arith.constant 0 : i32
        %35 = tpu.memref_slice %arg5[%33, %c0_i32_26] : memref<256x128xf32, #tpu.memory_space<vmem>> -> memref<1x128xf32, #tpu.memory_space<vmem>>
        %36 = tpu.memref_slice %arg6[%c0_i32_24] : memref<2x!tpu.dma_semaphore, #tpu.memory_space<semaphore_mem>> -> memref<1x!tpu.dma_semaphore, #tpu.memory_space<semaphore_mem>>
        %37 = tpu.memref_squeeze %36 : memref<1x!tpu.dma_semaphore, #tpu.memory_space<semaphore_mem>> -> memref<!tpu.dma_semaphore, #tpu.memory_space<semaphore_mem>>
        tpu.enqueue_dma source(%34 : memref<1x128xf32, #tpu.memory_space<any>>) target(%35 : memref<1x128xf32, #tpu.memory_space<vmem>>) target_semaphore(%37 : memref<!tpu.dma_semaphore, #tpu.memory_space<semaphore_mem>>)
      }
      %c128_i32_19 = arith.constant 128 : i32
    } else {
    }
    %c2_i32 = arith.constant 2 : i32
    %c0_i32_1 = arith.constant 0 : i32
    %3 = arith.cmpi eq, %c2_i32, %c0_i32_1 : i32
    %c1_i32 = arith.constant 1 : i32
    %4 = arith.select %3, %c1_i32, %c2_i32 : i32
    %5 = arith.remsi %arg0, %4 : i32
    %c0_i32_2 = arith.constant 0 : i32
    %6 = arith.cmpi ne, %5, %c0_i32_2 : i32
    %c0_i32_3 = arith.constant 0 : i32
    %7 = arith.cmpi slt, %5, %c0_i32_3 : i32
    %c0_i32_4 = arith.constant 0 : i32
    %8 = arith.cmpi slt, %4, %c0_i32_4 : i32
    %9 = arith.xori %7, %8 : i1
    %10 = arith.andi %9, %6 : i1
    %11 = arith.addi %5, %4 : i32
    %12 = arith.select %10, %11, %5 : i32
    %c1_i32_5 = arith.constant 1 : i32
    %13 = arith.addi %arg0, %c1_i32_5 : i32
    %c1_i32_6 = arith.constant 1 : i32
    %14 = arith.cmpi slt, %13, %c1_i32_6 : i32
    %15 = arith.extui %14 : i1 to i32
    %c0_i32_7 = arith.constant 0 : i32
    %16 = arith.cmpi ne, %15, %c0_i32_7 : i32
    scf.if %16 {
      %c1_i32_16 = arith.constant 1 : i32
      %26 = arith.addi %arg0, %c1_i32_16 : i32
      %c1_i32_17 = arith.constant 1 : i32
      %27 = arith.subi %c1_i32_17, %12 : i32
      %c128_i32_18 = arith.constant 128 : i32
      %28 = arith.muli %27, %c128_i32_18 : i32
      %c0_i32_19 = arith.constant 0 : i32
      %c128_i32_20 = arith.constant 128 : i32
      %29 = arith.addi %c0_i32_19, %c128_i32_20 : i32
      %c1_i32_21 = arith.constant 1 : i32
      scf.for %arg7 = %c0_i32_19 to %29 step %c1_i32_21  : i32 {
        %c1_i32_23 = arith.constant 1 : i32
        %30 = arith.muli %arg7, %c1_i32_23 : i32
        %c0_i32_24 = arith.constant 0 : i32
        %31 = arith.addi %c0_i32_24, %30 : i32
        %c128_i32_25 = arith.constant 128 : i32
        %32 = arith.muli %26, %c128_i32_25 : i32
        %33 = arith.addi %32, %31 : i32
        %c127_i32 = arith.constant 127 : i32
        %34 = arith.minsi %33, %c127_i32 : i32
        %35 = arith.index_cast %34 : i32 to index
        %36 = memref.load %arg1[%35] : memref<128xi32, #tpu.memory_space<smem>>
        %37 = arith.addi %28, %31 : i32
        %c0_i32_26 = arith.constant 0 : i32
        %38 = tpu.memref_slice %arg3[%36, %c0_i32_26] : memref<128x128xf32, #tpu.memory_space<any>> -> memref<1x128xf32, #tpu.memory_space<any>>
        %c0_i32_27 = arith.constant 0 : i32
        %39 = tpu.memref_slice %arg5[%37, %c0_i32_27] : memref<256x128xf32, #tpu.memory_space<vmem>> -> memref<1x128xf32, #tpu.memory_space<vmem>>
        %40 = tpu.memref_slice %arg6[%27] : memref<2x!tpu.dma_semaphore, #tpu.memory_space<semaphore_mem>> -> memref<1x!tpu.dma_semaphore, #tpu.memory_space<semaphore_mem>>
        %41 = tpu.memref_squeeze %40 : memref<1x!tpu.dma_semaphore, #tpu.memory_space<semaphore_mem>> -> memref<!tpu.dma_semaphore, #tpu.memory_space<semaphore_mem>>
        tpu.enqueue_dma source(%38 : memref<1x128xf32, #tpu.memory_space<any>>) target(%39 : memref<1x128xf32, #tpu.memory_space<vmem>>) target_semaphore(%41 : memref<!tpu.dma_semaphore, #tpu.memory_space<semaphore_mem>>)
      }
      %c128_i32_22 = arith.constant 128 : i32
    } else {
    }
    %c128_i32 = arith.constant 128 : i32
    %17 = arith.muli %12, %c128_i32 : i32
    %18 = tpu.assume_multiple %17, 128 : i32
    %c0_i32_8 = arith.constant 0 : i32
    %c128_i32_9 = arith.constant 128 : i32
    %19 = arith.addi %c0_i32_8, %c128_i32_9 : i32
    %c1_i32_10 = arith.constant 1 : i32
    scf.for %arg7 = %c0_i32_8 to %19 step %c1_i32_10  : i32 {
      %c1_i32_16 = arith.constant 1 : i32
      %26 = arith.muli %arg7, %c1_i32_16 : i32
      %c0_i32_17 = arith.constant 0 : i32
      %27 = arith.addi %c0_i32_17, %26 : i32
      %28 = arith.addi %18, %27 : i32
      %c0_i32_18 = arith.constant 0 : i32
      %c0_i32_19 = arith.constant 0 : i32
      %29 = tpu.memref_slice %arg3[%c0_i32_18, %c0_i32_19] : memref<128x128xf32, #tpu.memory_space<any>> -> memref<1x128xf32, #tpu.memory_space<any>>
      %c0_i32_20 = arith.constant 0 : i32
      %30 = tpu.memref_slice %arg5[%28, %c0_i32_20] : memref<256x128xf32, #tpu.memory_space<vmem>> -> memref<1x128xf32, #tpu.memory_space<vmem>>
      %31 = tpu.memref_slice %arg6[%12] : memref<2x!tpu.dma_semaphore, #tpu.memory_space<semaphore_mem>> -> memref<1x!tpu.dma_semaphore, #tpu.memory_space<semaphore_mem>>
      %32 = tpu.memref_squeeze %31 : memref<1x!tpu.dma_semaphore, #tpu.memory_space<semaphore_mem>> -> memref<!tpu.dma_semaphore, #tpu.memory_space<semaphore_mem>>
      tpu.wait_dma2 semaphore(%32 : memref<!tpu.dma_semaphore, #tpu.memory_space<semaphore_mem>>) src(%29 : memref<1x128xf32, #tpu.memory_space<any>>) dst(%30 : memref<1x128xf32, #tpu.memory_space<vmem>>)
    }
    %c128_i32_11 = arith.constant 128 : i32
    %20 = arith.index_cast %18 : i32 to index
    %c0 = arith.constant 0 : index
    %21 = vector.load %arg5[%20, %c0] : memref<256x128xf32, #tpu.memory_space<vmem>>, vector<128x128xf32>
    %c0_12 = arith.constant 0 : index
    %c0_13 = arith.constant 0 : index
    %22 = vector.load %arg2[%c0_12, %c0_13] : memref<128x1xf32, #tpu.memory_space<vmem>>, vector<128x1xf32>
    %23 = vector.broadcast %22 : vector<128x1xf32> to vector<128x128xf32>
    %24 = arith.mulf %21, %23 : vector<128x128xf32>
    %c0_14 = arith.constant 0 : index
    %c0_15 = arith.constant 0 : index
    %25 = vector.load %arg4[%c0_14, %c0_15] : memref<128x128xf32, #tpu.memory_space<vmem>>, vector<128x128xf32>
    tpu.vector_store %arg4[%c0_14, %c0_15], %24 {strides = array<i32>} : memref<128x128xf32, #tpu.memory_space<vmem>>, vector<128x128xf32>,
    return
  }
  func.func @transform_0(%arg0: i32, %arg1: memref<128xi32, #tpu.memory_space<smem>>) -> (i32, i32) {
    %c0_i32 = arith.constant 0 : i32
    %c0_i32_0 = arith.constant 0 : i32
    return %arg0, %c0_i32 : i32, i32
  }
  func.func @transform_2(%arg0: i32, %arg1: memref<128xi32, #tpu.memory_space<smem>>) -> (i32, i32) {
    %c0_i32 = arith.constant 0 : i32
    %c0_i32_0 = arith.constant 0 : i32
    return %arg0, %c0_i32 : i32, i32
  }
}

</mosaic_0001>

<llo_original>
// kernel: embedding_dropout_forward.1
$region0: #{embedding_dropout_forward.1}
  #allocation0 [shape = 'u32[]', space=smem, size = 0x4, offset = 0x4, fixed_abs, tag = 'smem constant byte address 0x4 - core index']
  #allocation1 [shape = 'u32[144,128]{1,0:T(1,128)}', space=vmem, size = 0x12000, scoped, tag = 'internal scratch']
  #allocation2 [shape = 'f32[256,128]{1,0:T(8,128)}', space=vmem, size = 0x20000, scoped, tag = 'scratch operand']
  #allocation3 [shape = 's32[2]{0}', space=sflag, size = 0x8, scoped, tag = 'scratch operand']
  #allocation4 [shape = 's32[1]{0}', space=sflag, size = 0x4, scoped, tag = 'scoped memory for embedding_dropout_forward.1']
  #allocation5 [shape = 'u8[512]{0}', space=smem, size = 0x200, scoped, tag = 'prefetched SMEM operand 0']
  #allocation6 [shape = 's32[]', space=sflag, size = 0x4, offset = 0, fixed_abs, tag = 'sflag constant byte address 0x0 - dummy sync flag']
  #allocation7 [shape = 's32[]', space=sflag, size = 0x4, offset = 0, fixed_abs, tag = 'sflag constant byte address 0x0 - dummy sync flag']
  %s0 = inlined_call_operand.vmem [shape: s32[128], index: 0, kind: input, shape index: {}]
  %s1 = inlined_call_operand.vmem [shape: f32[128,1], index: 1, kind: input, shape index: {}]
  %s2 = inlined_call_operand.vmem [shape: f32[128,128], index: 2, kind: input, shape index: {}]
  %s3 = inlined_call_operand.vmem [shape: f32[128,128], index: 3, kind: output, shape index: {}]
  %s4 = sld [smem:[#allocation0]]
  $region103: #{embedding_dropout_forward.1} parent=0
    _
  %s6 = ssub.s32 1, %s4
  %s7 = scalar_select 0, %s6, %s4
  %s8 = sshll.u32 %s0, 4
  %s9 = int_to_ptr.vmem [resolvable:$true] %s8
  %11 = dma.vmem_to_smem %s9, 16, [#allocation5], [#allocation4]
  %12 = dma.done [#allocation4], 16
  %13 = sfence
  // Predicated region
  $region2: #{embedding_dropout_forward.1} parent=0 // pred_check
    _
  $region3: #{embedding_dropout_forward.1} parent=0 // pred_check_branch
    %15 = sbr.rel (0) target = $region5
  $region4: #{embedding_dropout_forward.1} parent=0 // pred_region
    _
  $region5: #{embedding_dropout_forward.1} parent=0 // pred_fallthru
    _
  %p16 = scmp.eq.s32.totalorder 0, 0
  // Predicated region
  $region6: #{embedding_dropout_forward.1} parent=0 // pred_check
    %p17 = pneg %p16
  $region7: #{embedding_dropout_forward.1} parent=0 // pred_check_branch
    %19 = sbr.rel (%p17) target = $region9
  $region8: #{embedding_dropout_forward.1} parent=0 // pred_region
    loop: start=0, step=1, limit=128
    $region10: #{embedding_dropout_forward.1} parent=8 // loop_pre_header
      _
    $region11: #{embedding_dropout_forward.1} parent=8 // loop_header
      %s21 = sphi 0, %s25
      %p22 = scmp.ge.s32.totalorder %s21, 128
    $region12: #{embedding_dropout_forward.1} parent=8 // loop_header_branch
      %24 = sbr.rel (%p22) target = $region16
    $region13: #{embedding_dropout_forward.1} parent=8 // loop_body
      %p26 = scmp.lt.s32.totalorder %s21, 127
      %s27 = scalar_select %p26, %s21, 127
      %s28 = sld [smem:[#allocation5 + %s27]]
      %s29 = scalar_lea.vmem %s2, %s28
      %s30 = scalar_lea.vmem [#allocation2], %s21
      %p32 = scmp.lt.u32.totalorder 1, 8
      %p33 = pneg %p32
      // Predicated region
      $region17: #{embedding_dropout_forward.1} parent=13 // pred_check
        _
      $region18: #{embedding_dropout_forward.1} parent=13 // pred_check_branch
        %35 = sbr.rel (%p32) target = $region20
      $region19: #{embedding_dropout_forward.1} parent=13 // pred_region
        %s50 = sand.u32 1, 7
        %p51 = scmp.eq.s32.totalorder %s50, 0
        %p52 = pneg %p51
        // Predicated region
        $region32: #{embedding_dropout_forward.1} parent=19 // pred_check
          _
        $region33: #{embedding_dropout_forward.1} parent=19 // pred_check_branch
          %54 = sbr.rel (%p51) target = $region35
        $region34: #{embedding_dropout_forward.1} parent=19 // pred_region
          %s55 = sand.u32 1, 7
          %s56 = ssub.s32 1, %s55
          %s57 = scalar_lea.vmem %s29, %s56
          %s58 = ssub.s32 1, %s55
          %s59 = scalar_lea.vmem %s30, %s58 [#allocation2]
          %s60 = sshllo.u32 0, %s55
          loop: start=0, step=1, limit=1
          $region36: #{embedding_dropout_forward.1} parent=34 // loop_pre_header
            _
          $region37: #{embedding_dropout_forward.1} parent=34 // loop_header
            %s62 = sphi 0, %s66
            %p63 = scmp.ge.s32.totalorder %s62, 1
            %s67 = sphi %s57, %s57
            %s68 = sphi %s59, %s59
          $region38: #{embedding_dropout_forward.1} parent=34 // loop_header_branch
            %65 = sbr.rel (%p63) target = $region42
          $region39: #{embedding_dropout_forward.1} parent=34 // loop_body
            %v69 = vld [vmem:[%s67] sm:%s60]
            %70 = vst [vmem:[%s68] sm:%s60] %v69
          $region40: #{embedding_dropout_forward.1} parent=34 // loop_footer
            %s66 = sadd.s32 1, %s62
          $region41: #{embedding_dropout_forward.1} parent=34 // loop_footer_branch
            %61 = sbr.rel target = $region37
          $region42: #{embedding_dropout_forward.1} parent=34 // loop_exit
            _
        $region35: #{embedding_dropout_forward.1} parent=19 // pred_fallthru
          _
      $region20: #{embedding_dropout_forward.1} parent=13 // pred_fallthru
        _
      // Predicated region
      $region21: #{embedding_dropout_forward.1} parent=13 // pred_check
        %p36 = pneg %p32
      $region22: #{embedding_dropout_forward.1} parent=13 // pred_check_branch
        %38 = sbr.rel (%p36) target = $region24
      $region23: #{embedding_dropout_forward.1} parent=13 // pred_region
        %s39 = sshllo.u32 0, 1
        loop: start=0, step=1, limit=1
        $region25: #{embedding_dropout_forward.1} parent=23 // loop_pre_header
          _
        $region26: #{embedding_dropout_forward.1} parent=23 // loop_header
          %s41 = sphi 0, %s45
          %p42 = scmp.ge.s32.totalorder %s41, 1
          %s46 = sphi %s29, %s29
          %s47 = sphi %s30, %s30
        $region27: #{embedding_dropout_forward.1} parent=23 // loop_header_branch
          %44 = sbr.rel (%p42) target = $region31
        $region28: #{embedding_dropout_forward.1} parent=23 // loop_body
          %v48 = vld [vmem:[%s46] sm:%s39]
          %49 = vst [vmem:[%s47] sm:%s39] %v48
        $region29: #{embedding_dropout_forward.1} parent=23 // loop_footer
          %s45 = sadd.s32 1, %s41
        $region30: #{embedding_dropout_forward.1} parent=23 // loop_footer_branch
          %40 = sbr.rel target = $region26
        $region31: #{embedding_dropout_forward.1} parent=23 // loop_exit
          _
      $region24: #{embedding_dropout_forward.1} parent=13 // pred_fallthru
        _
      // Predicated region
      $region43: #{embedding_dropout_forward.1} parent=13 // pred_check
        _
      $region44: #{embedding_dropout_forward.1} parent=13 // pred_check_branch
        %73 = sbr.rel (0) target = $region46
      $region45: #{embedding_dropout_forward.1} parent=13 // pred_region
        %74 = vsyncadd [#allocation3], 16
      $region46: #{embedding_dropout_forward.1} parent=13 // pred_fallthru
        _
    $region14: #{embedding_dropout_forward.1} parent=8 // loop_footer
      %s25 = sadd.s32 1, %s21
    $region15: #{embedding_dropout_forward.1} parent=8 // loop_footer_branch
      %20 = sbr.rel target = $region11
    $region16: #{embedding_dropout_forward.1} parent=8 // loop_exit
      _
  $region9: #{embedding_dropout_forward.1} parent=0 // pred_fallthru
    _
  %s75 = ssub.s32 0, 0
  %s76 = ssub.s32 0, 0
  %p77 = scmp.ne.s32.totalorder 0, 0
  %p78 = scmp.lt.s32.totalorder 0, 0
  %p79 = pnand %p78, %p77
  %p80 = pneg %p79
  %s81 = sadd.s32 0, 2
  %s82 = scalar_select %p80, %s81, 0
  %s83 = sadd.s32 0, 1
  %p84 = scmp.lt.s32.totalorder %s83, 1
  // Predicated region
  $region47: #{embedding_dropout_forward.1} parent=0 // pred_check
    %p85 = pneg %p84
  $region48: #{embedding_dropout_forward.1} parent=0 // pred_check_branch
    %87 = sbr.rel (%p85) target = $region50
  $region49: #{embedding_dropout_forward.1} parent=0 // pred_region
    %s88 = ssub.s32 1, %s82
    %s89 = smul.u32 %s88, 128
    loop: start=0, step=1, limit=128
    $region51: #{embedding_dropout_forward.1} parent=49 // loop_pre_header
      _
    $region52: #{embedding_dropout_forward.1} parent=49 // loop_header
      %s91 = sphi 0, %s95
      %p92 = scmp.ge.s32.totalorder %s91, 128
    $region53: #{embedding_dropout_forward.1} parent=49 // loop_header_branch
      %94 = sbr.rel (%p92) target = $region57
    $region54: #{embedding_dropout_forward.1} parent=49 // loop_body
      %s96 = smul.u32 %s83, 128
      %s97 = sadd.s32 %s96, %s91
      %p98 = scmp.lt.s32.totalorder %s97, 127
      %s99 = scalar_select %p98, %s97, 127
      %s100 = sld [smem:[#allocation5 + %s99]]
      %s101 = sadd.s32 %s89, %s91
      %s102 = scalar_lea.vmem %s2, %s100
      %s103 = scalar_lea.vmem [#allocation2], %s101
      %s104 = scalar_lea.sflag [#allocation3], %s88
      %p106 = scmp.lt.u32.totalorder 1, 8
      %p107 = pneg %p106
      // Predicated region
      $region58: #{embedding_dropout_forward.1} parent=54 // pred_check
        _
      $region59: #{embedding_dropout_forward.1} parent=54 // pred_check_branch
        %109 = sbr.rel (%p106) target = $region61
      $region60: #{embedding_dropout_forward.1} parent=54 // pred_region
        %s124 = sand.u32 1, 7
        %p125 = scmp.eq.s32.totalorder %s124, 0
        %p126 = pneg %p125
        // Predicated region
        $region73: #{embedding_dropout_forward.1} parent=60 // pred_check
          _
        $region74: #{embedding_dropout_forward.1} parent=60 // pred_check_branch
          %128 = sbr.rel (%p125) target = $region76
        $region75: #{embedding_dropout_forward.1} parent=60 // pred_region
          %s129 = sand.u32 1, 7
          %s130 = ssub.s32 1, %s129
          %s131 = scalar_lea.vmem %s102, %s130
          %s132 = ssub.s32 1, %s129
          %s133 = scalar_lea.vmem %s103, %s132 [#allocation2]
          %s134 = sshllo.u32 0, %s129
          loop: start=0, step=1, limit=1
          $region77: #{embedding_dropout_forward.1} parent=75 // loop_pre_header
            _
          $region78: #{embedding_dropout_forward.1} parent=75 // loop_header
            %s136 = sphi 0, %s140
            %p137 = scmp.ge.s32.totalorder %s136, 1
            %s141 = sphi %s131, %s131
            %s142 = sphi %s133, %s133
          $region79: #{embedding_dropout_forward.1} parent=75 // loop_header_branch
            %139 = sbr.rel (%p137) target = $region83
          $region80: #{embedding_dropout_forward.1} parent=75 // loop_body
            %v143 = vld [vmem:[%s141] sm:%s134]
            %144 = vst [vmem:[%s142] sm:%s134] %v143
          $region81: #{embedding_dropout_forward.1} parent=75 // loop_footer
            %s140 = sadd.s32 1, %s136
          $region82: #{embedding_dropout_forward.1} parent=75 // loop_footer_branch
            %135 = sbr.rel target = $region78
          $region83: #{embedding_dropout_forward.1} parent=75 // loop_exit
            _
        $region76: #{embedding_dropout_forward.1} parent=60 // pred_fallthru
          _
      $region61: #{embedding_dropout_forward.1} parent=54 // pred_fallthru
        _
      // Predicated region
      $region62: #{embedding_dropout_forward.1} parent=54 // pred_check
        %p110 = pneg %p106
      $region63: #{embedding_dropout_forward.1} parent=54 // pred_check_branch
        %112 = sbr.rel (%p110) target = $region65
      $region64: #{embedding_dropout_forward.1} parent=54 // pred_region
        %s113 = sshllo.u32 0, 1
        loop: start=0, step=1, limit=1
        $region66: #{embedding_dropout_forward.1} parent=64 // loop_pre_header
          _
        $region67: #{embedding_dropout_forward.1} parent=64 // loop_header
          %s115 = sphi 0, %s119
          %p116 = scmp.ge.s32.totalorder %s115, 1
          %s120 = sphi %s102, %s102
          %s121 = sphi %s103, %s103
        $region68: #{embedding_dropout_forward.1} parent=64 // loop_header_branch
          %118 = sbr.rel (%p116) target = $region72
        $region69: #{embedding_dropout_forward.1} parent=64 // loop_body
          %v122 = vld [vmem:[%s120] sm:%s113]
          %123 = vst [vmem:[%s121] sm:%s113] %v122
        $region70: #{embedding_dropout_forward.1} parent=64 // loop_footer
          %s119 = sadd.s32 1, %s115
        $region71: #{embedding_dropout_forward.1} parent=64 // loop_footer_branch
          %114 = sbr.rel target = $region67
        $region72: #{embedding_dropout_forward.1} parent=64 // loop_exit
          _
      $region65: #{embedding_dropout_forward.1} parent=54 // pred_fallthru
        _
      // Predicated region
      $region84: #{embedding_dropout_forward.1} parent=54 // pred_check
        _
      $region85: #{embedding_dropout_forward.1} parent=54 // pred_check_branch
        %147 = sbr.rel (0) target = $region87
      $region86: #{embedding_dropout_forward.1} parent=54 // pred_region
        %148 = vsyncadd %s104, 16
      $region87: #{embedding_dropout_forward.1} parent=54 // pred_fallthru
        _
    $region55: #{embedding_dropout_forward.1} parent=49 // loop_footer
      %s95 = sadd.s32 1, %s91
    $region56: #{embedding_dropout_forward.1} parent=49 // loop_footer_branch
      %90 = sbr.rel target = $region52
    $region57: #{embedding_dropout_forward.1} parent=49 // loop_exit
      _
  $region50: #{embedding_dropout_forward.1} parent=0 // pred_fallthru
    _
  %s149 = smul.u32 %s82, 128
  loop: start=0, step=1, limit=128
  $region88: #{embedding_dropout_forward.1} parent=0 // loop_pre_header
    _
  $region89: #{embedding_dropout_forward.1} parent=0 // loop_header
    %s151 = sphi 0, %s155
    %p152 = scmp.ge.s32.totalorder %s151, 128
  $region90: #{embedding_dropout_forward.1} parent=0 // loop_header_branch
    %154 = sbr.rel (%p152) target = $region94
  $region91: #{embedding_dropout_forward.1} parent=0 // loop_body
    %s156 = scalar_lea.sflag [#allocation3], %s82
    %s157 = smul.u32 1, 1
    %s158 = sshll.u32 %s157, 4
    %159 = dma.done %s156, %s158
  $region92: #{embedding_dropout_forward.1} parent=0 // loop_footer
    %s155 = sadd.s32 1, %s151
  $region93: #{embedding_dropout_forward.1} parent=0 // loop_footer_branch
    %150 = sbr.rel target = $region89
  $region94: #{embedding_dropout_forward.1} parent=0 // loop_exit
    _
  %s160 = scalar_lea.vmem [#allocation2], %s149
  %v161 = vld [vmem:[%s160] sm:$0xff]
  %v162 = vld [vmem:[%s160 + $0x8] sm:$0xff]
  %v163 = vld [vmem:[%s160 + $0x10] sm:$0xff]
  %v164 = vld [vmem:[%s160 + $0x18] sm:$0xff]
  %v165 = vld [vmem:[%s160 + $0x20] sm:$0xff]
  %v166 = vld [vmem:[%s160 + $0x28] sm:$0xff]
  %v167 = vld [vmem:[%s160 + $0x30] sm:$0xff]
  %v168 = vld [vmem:[%s160 + $0x38] sm:$0xff]
  %v169 = vld [vmem:[%s160 + $0x40] sm:$0xff]
  %v170 = vld [vmem:[%s160 + $0x48] sm:$0xff]
  %v171 = vld [vmem:[%s160 + $0x50] sm:$0xff]
  %v172 = vld [vmem:[%s160 + $0x58] sm:$0xff]
  %v173 = vld [vmem:[%s160 + $0x60] sm:$0xff]
  %v174 = vld [vmem:[%s160 + $0x68] sm:$0xff]
  %v175 = vld [vmem:[%s160 + $0x70] sm:$0xff]
  %v176 = vld [vmem:[%s160 + $0x78] sm:$0xff]
  %v177 = vld [vmem:[%s1] sm:$0xff]
  %v178 = vld [vmem:[%s1 + $0x8] sm:$0xff]
  %v179 = vld [vmem:[%s1 + $0x10] sm:$0xff]
  %v180 = vld [vmem:[%s1 + $0x18] sm:$0xff]
  %v181 = vld [vmem:[%s1 + $0x20] sm:$0xff]
  %v182 = vld [vmem:[%s1 + $0x28] sm:$0xff]
  %v183 = vld [vmem:[%s1 + $0x30] sm:$0xff]
  %v184 = vld [vmem:[%s1 + $0x38] sm:$0xff]
  %v185 = vld [vmem:[%s1 + $0x40] sm:$0xff]
  %v186 = vld [vmem:[%s1 + $0x48] sm:$0xff]
  %v187 = vld [vmem:[%s1 + $0x50] sm:$0xff]
  %v188 = vld [vmem:[%s1 + $0x58] sm:$0xff]
  %v189 = vld [vmem:[%s1 + $0x60] sm:$0xff]
  %v190 = vld [vmem:[%s1 + $0x68] sm:$0xff]
  %v191 = vld [vmem:[%s1 + $0x70] sm:$0xff]
  %v192 = vld [vmem:[%s1 + $0x78] sm:$0xff]
  %194 = vset.pattern.permute.xlu0 0
  %195 = vperm.xlu0 %194, %v177
  %v196 = vpop.permute.xlu0 %195
  %199 = vset.pattern.permute.xlu0 0
  %200 = vperm.xlu0 %199, %v178
  %v201 = vpop.permute.xlu0 %200
  %204 = vset.pattern.permute.xlu0 0
  %205 = vperm.xlu0 %204, %v179
  %v206 = vpop.permute.xlu0 %205
  %209 = vset.pattern.permute.xlu0 0
  %210 = vperm.xlu0 %209, %v180
  %v211 = vpop.permute.xlu0 %210
  %214 = vset.pattern.permute.xlu0 0
  %215 = vperm.xlu0 %214, %v181
  %v216 = vpop.permute.xlu0 %215
  %219 = vset.pattern.permute.xlu0 0
  %220 = vperm.xlu0 %219, %v182
  %v221 = vpop.permute.xlu0 %220
  %224 = vset.pattern.permute.xlu0 0
  %225 = vperm.xlu0 %224, %v183
  %v226 = vpop.permute.xlu0 %225
  %229 = vset.pattern.permute.xlu0 0
  %230 = vperm.xlu0 %229, %v184
  %v231 = vpop.permute.xlu0 %230
  %234 = vset.pattern.permute.xlu0 0
  %235 = vperm.xlu0 %234, %v185
  %v236 = vpop.permute.xlu0 %235
  %239 = vset.pattern.permute.xlu0 0
  %240 = vperm.xlu0 %239, %v186
  %v241 = vpop.permute.xlu0 %240
  %244 = vset.pattern.permute.xlu0 0
  %245 = vperm.xlu0 %244, %v187
  %v246 = vpop.permute.xlu0 %245
  %249 = vset.pattern.permute.xlu0 0
  %250 = vperm.xlu0 %249, %v188
  %v251 = vpop.permute.xlu0 %250
  %254 = vset.pattern.permute.xlu0 0
  %255 = vperm.xlu0 %254, %v189
  %v256 = vpop.permute.xlu0 %255
  %259 = vset.pattern.permute.xlu0 0
  %260 = vperm.xlu0 %259, %v190
  %v261 = vpop.permute.xlu0 %260
  %264 = vset.pattern.permute.xlu0 0
  %265 = vperm.xlu0 %264, %v191
  %v266 = vpop.permute.xlu0 %265
  %269 = vset.pattern.permute.xlu0 0
  %270 = vperm.xlu0 %269, %v192
  %v271 = vpop.permute.xlu0 %270
  %v273 = vmul.f32 %v161, %v196
  %v274 = vmul.f32 %v162, %v201
  %v275 = vmul.f32 %v163, %v206
  %v276 = vmul.f32 %v164, %v211
  %v277 = vmul.f32 %v165, %v216
  %v278 = vmul.f32 %v166, %v221
  %v279 = vmul.f32 %v167, %v226
  %v280 = vmul.f32 %v168, %v231
  %v281 = vmul.f32 %v169, %v236
  %v282 = vmul.f32 %v170, %v241
  %v283 = vmul.f32 %v171, %v246
  %v284 = vmul.f32 %v172, %v251
  %v285 = vmul.f32 %v173, %v256
  %v286 = vmul.f32 %v174, %v261
  %v287 = vmul.f32 %v175, %v266
  %v288 = vmul.f32 %v176, %v271
  %289 = vst [vmem:[%s3] sm:$0xff] %v273
  %290 = vst [vmem:[%s3 + $0x8] sm:$0xff] %v274
  %291 = vst [vmem:[%s3 + $0x10] sm:$0xff] %v275
  %292 = vst [vmem:[%s3 + $0x18] sm:$0xff] %v276
  %293 = vst [vmem:[%s3 + $0x20] sm:$0xff] %v277
  %294 = vst [vmem:[%s3 + $0x28] sm:$0xff] %v278
  %295 = vst [vmem:[%s3 + $0x30] sm:$0xff] %v279
  %296 = vst [vmem:[%s3 + $0x38] sm:$0xff] %v280
  %297 = vst [vmem:[%s3 + $0x40] sm:$0xff] %v281
  %298 = vst [vmem:[%s3 + $0x48] sm:$0xff] %v282
  %299 = vst [vmem:[%s3 + $0x50] sm:$0xff] %v283
  %300 = vst [vmem:[%s3 + $0x58] sm:$0xff] %v284
  %301 = vst [vmem:[%s3 + $0x60] sm:$0xff] %v285
  %302 = vst [vmem:[%s3 + $0x68] sm:$0xff] %v286
  %303 = vst [vmem:[%s3 + $0x70] sm:$0xff] %v287
  %304 = vst [vmem:[%s3 + $0x78] sm:$0xff] %v288
  // Predicated region
  $region95: #{embedding_dropout_forward.1} parent=0 // pred_check
    _
  $region96: #{embedding_dropout_forward.1} parent=0 // pred_check_branch
    %306 = sbr.rel (0) target = $region98
  $region97: #{embedding_dropout_forward.1} parent=0 // pred_region
    _
  $region98: #{embedding_dropout_forward.1} parent=0 // pred_fallthru
    _
  // Predicated region
  $region99: #{embedding_dropout_forward.1} parent=0 // pred_check
    _
  $region100: #{embedding_dropout_forward.1} parent=0 // pred_check_branch
    %308 = sbr.rel (0) target = $region102
  $region101: #{embedding_dropout_forward.1} parent=0 // pred_region
    _
  $region102: #{embedding_dropout_forward.1} parent=0 // pred_fallthru
    _
  %309 = vsyncmov [#allocation3]
  %s310 = vpop.sfrf %309
  %p311 = scmp.eq.s32.totalorder %s310, 0
  %p312 = pneg %p311
  %314 = shalt.err (%p312)
  %s315 = scalar_lea.sflag [#allocation3], 1
  %316 = vsyncmov %s315
  %s317 = vpop.sfrf %316
  %p318 = scmp.eq.s32.totalorder %s317, 0
  %p319 = pneg %p318
  %321 = shalt.err (%p319)

</llo_original>
